<compile_context>
chip_gen: v6e
topology: v6e:2x2x1
jax: 0.10.0
libtpu: 0.0.40
codegen_flags: <defaults>
</compile_context>

<pallas_src>
from functools import partial

import jax
import jax.numpy as jnp
from jax.experimental import pallas as pl
from jax.experimental.pallas import tpu as pltpu


def _focal_loss_kernel(logits_ref, tgt_ref, loss_ref, cnt_ref, *, gamma,
                       ignore_index, hw, tile):
    """One tile: logits (1, C, TILE), targets (1, 1, TILE) int32.

    Accumulates lane-wise partial focal-loss sums and valid-pixel counts into
    (1, 1, TILE) output blocks that stay resident across the pixel-tile axis.
    """
    p = pl.program_id(1)

    @pl.when(p == 0)
    def _():
        loss_ref[...] = jnp.zeros_like(loss_ref)
        cnt_ref[...] = jnp.zeros_like(cnt_ref)

    x = logits_ref[...].astype(jnp.float32)               # (1, C, TILE)
    t = tgt_ref[...]                                       # (1, 1, TILE) int32

    # Ragged-tail lane mask: global pixel index < H*W (replaces wrapper pad).
    pix = p * tile + jax.lax.broadcasted_iota(jnp.int32, t.shape, 2)
    in_range = pix < hw                                    # (1, 1, TILE) bool

    # log-softmax cross entropy at the target class (classes on sublanes).
    m = jnp.max(x, axis=1, keepdims=True)                  # (1, 1, TILE)
    e = jnp.exp(x - m)                                      # (1, C, TILE), reused for pt
    denom = jnp.sum(e, axis=1, keepdims=True)               # (1, 1, TILE)

    cls = jax.lax.broadcasted_iota(jnp.int32, x.shape, 1)   # (1, C, TILE)
    hit = cls == t                                           # all-false for ignore_index
    tgt_logit = jnp.sum(jnp.where(hit, x, 0.0), axis=1, keepdims=True)
    tgt_e = jnp.sum(jnp.where(hit, e, 0.0), axis=1, keepdims=True)

    ce = jnp.log(denom) + m - tgt_logit                     # per-pixel CE (stable)
    pt = tgt_e / denom                                       # == exp(-ce), reuses exp

    valid_b = jnp.logical_and(t != ignore_index, in_range)   # (1, 1, TILE) bool
    valid = valid_b.astype(jnp.float32)

    w = jnp.maximum(1.0 - pt, 0.0)                           # clamp: no NaN from pow
    if float(gamma).is_integer() and gamma >= 0:
        wg = jnp.ones_like(w)
        for _ in range(int(gamma)):                          # gamma=2 -> w*w (VPU only)
            wg = wg * w
    else:
        wg = w ** gamma

    # Lane-wise select: keeps any garbage (even NaN) in out-of-range padded
    # lanes or ignore_index pixels out of the accumulators without touching
    # the full (C, TILE) block.
    focal = jnp.where(valid_b, wg * ce, 0.0)
    loss_ref[...] += focal                                   # lane-wise VPU accumulate
    cnt_ref[...] += valid


def _pick_tile_pixels(hw, c, itemsize, budget_bytes=16 << 20):
    """Largest 128-multiple pixel tile whose working set fits a VMEM budget."""
    hw_r = pl.cdiv(hw, 128) * 128
    # double-buffered logits + target blocks, ~6 live (C, TILE) f32 temps,
    # ~12 (1, TILE) f32/i32 temps, double-buffered resident outputs.
    per_lane = 2 * c * itemsize + 2 * 4 + 6 * c * 4 + 12 * 4 + 16
    tile = max(512, (budget_bytes // per_lane) // 128 * 128)
    return min(tile, hw_r, 32768)


def focal_loss(logits, targets, *, gamma=2.0, alpha=None, ignore_index=255,
               reduction="mean", tile_pixels=None,
               vmem_limit_bytes=32 * 1024 * 1024):
    """JAX/Pallas equivalent of FocalLoss.forward.

    logits:  (N, C, H, W) float
    targets: (N, H, W) int
    """
    assert alpha is None  # TODO(synk): per-class alpha weights (F.cross_entropy weight=)
    N, C, H, W = logits.shape
    HW = H * W

    # NCHW already has pixels contiguous in the trailing dims -> free reshape
    # (no transpose, no pad-concat, no extra HBM traffic).
    x = logits.reshape(N, C, HW)
    t = targets.reshape(N, 1, HW).astype(jnp.int32)

    if tile_pixels is None:
        tile_pixels = _pick_tile_pixels(HW, C, x.dtype.itemsize)
    assert tile_pixels % 128 == 0

    grid = (N, pl.cdiv(HW, tile_pixels))

    kernel = partial(_focal_loss_kernel, gamma=float(gamma),
                     ignore_index=int(ignore_index), hw=HW, tile=tile_pixels)

    loss_part, cnt_part = pl.pallas_call(
        kernel,
        out_shape=(jax.ShapeDtypeStruct((N, 1, tile_pixels), jnp.float32),
                   jax.ShapeDtypeStruct((N, 1, tile_pixels), jnp.float32)),
        grid_spec=pltpu.PrefetchScalarGridSpec(
            num_scalar_prefetch=0,
            grid=grid,
            in_specs=[
                pl.BlockSpec((1, C, tile_pixels), lambda n, p: (n, 0, p)),
                pl.BlockSpec((1, 1, tile_pixels), lambda n, p: (n, 0, p)),
            ],
            out_specs=[
                pl.BlockSpec((1, 1, tile_pixels), lambda n, p: (n, 0, 0)),
                pl.BlockSpec((1, 1, tile_pixels), lambda n, p: (n, 0, 0)),
            ],
        ),
        compiler_params=pltpu.CompilerParams(
            dimension_semantics=("parallel", "arbitrary"),
            vmem_limit_bytes=vmem_limit_bytes),
    )(x, t)

    s = jnp.sum(loss_part)          # tiny (N, 1, TILE) reductions, done by XLA
    n_valid = jnp.sum(cnt_part)
    if reduction == "mean":
        mean = s / jnp.maximum(n_valid, 1.0)
        return jnp.where(n_valid > 0, mean, s * 0.0)
    elif reduction == "sum":
        return s
    else:
        # TODO(synk): reduction='none' (per-pixel map) not emitted by this fused kernel
        raise NotImplementedError("reduction='none' not implemented in kernel")


def _focal_loss_ref(logits, targets, gamma=2.0, ignore_index=255,
                    reduction="mean"):
    """Pure-JAX reference mirroring the PyTorch module."""
    N, C, H, W = logits.shape
    x = jnp.transpose(logits, (0, 2, 3, 1)).reshape(-1, C).astype(jnp.float32)
    t = targets.reshape(-1).astype(jnp.int32)
    valid = t != ignore_index
    t_safe = jnp.where(valid, t, 0)
    logz = jax.nn.logsumexp(x, axis=-1)
    ce = logz - jnp.take_along_axis(x, t_safe[:, None], axis=-1)[:, 0]
    ce = jnp.where(valid, ce, 0.0)
    pt = jnp.exp(-ce)
    focal = (1.0 - pt) ** gamma * ce * valid.astype(jnp.float32)
    n = jnp.sum(valid.astype(jnp.float32))
    if reduction == "sum":
        return jnp.sum(focal)
    return jnp.where(n > 0, jnp.sum(focal) / jnp.maximum(n, 1.0), 0.0)


if __name__ == "__main__":
    key = jax.random.PRNGKey(0)
    k1, k2, k3 = jax.random.split(key, 3)

    N, C, H, W = 2, 4, 16, 16
    logits = jax.random.normal(k1, (N, C, H, W), dtype=jnp.float32)
    targets = jax.random.randint(k2, (N, H, W), 0, C, dtype=jnp.int32)
    # sprinkle some ignore_index pixels
    ignore_mask = jax.random.bernoulli(k3, 0.1, (N, H, W))
    targets = jnp.where(ignore_mask, 255, targets)

    out = focal_loss(logits, targets, gamma=2.0, ignore_index=255,
                     reduction="mean")
    out = jax.block_until_ready(out)
    ref = _focal_loss_ref(logits, targets, gamma=2.0, ignore_index=255)
    assert jnp.allclose(out, ref, atol=1e-5, rtol=1e-4), (out, ref)

    # sum reduction path
    out_s = jax.block_until_ready(
        focal_loss(logits, targets, gamma=2.0, ignore_index=255,
                   reduction="sum"))
    ref_s = _focal_loss_ref(logits, targets, gamma=2.0, ignore_index=255,
                            reduction="sum")
    assert jnp.allclose(out_s, ref_s, atol=1e-4, rtol=1e-4), (out_s, ref_s)

    # Ragged tail (H*W not a multiple of 128) exercises the in-kernel iota mask.
    k4, k5 = jax.random.split(k3)
    N2, C2, H2, W2 = 1, 6, 9, 10
    logits2 = jax.random.normal(k4, (N2, C2, H2, W2), dtype=jnp.float32)
    targets2 = jax.random.randint(k5, (N2, H2, W2), 0, C2, dtype=jnp.int32)
    out2 = jax.block_until_ready(
        focal_loss(logits2, targets2, gamma=2.0, ignore_index=255,
                   reduction="mean"))
    ref2 = _focal_loss_ref(logits2, targets2, gamma=2.0, ignore_index=255)
    assert jnp.allclose(out2, ref2, atol=1e-5, rtol=1e-4), (out2, ref2)

    print("KERNEL_OK")
</pallas_src>

<mosaic_0001>
module attributes {stable_mosaic.version = 11 : i64} {
  func.func @_focal_loss_kernel(%arg0: i32, %arg1: i32, %arg2: memref<1x4x256xf32, #tpu.memory_space<vmem>>, %arg3: memref<1x1x256xi32, #tpu.memory_space<vmem>>, %arg4: memref<1x1x256xf32, #tpu.memory_space<vmem>>, %arg5: memref<1x1x256xf32, #tpu.memory_space<vmem>>) attributes {dimension_semantics = [#tpu.dimension_semantics<parallel>, #tpu.dimension_semantics<arbitrary>], iteration_bounds = array<i64: 2, 1>, scalar_prefetch = 0 : i64, scratch_operands = 0 : i64, tpu.core_type = #tpu.core_type<tc>, window_params = [{transform_indices = @transform_0, window_bounds = array<i64: 1, 4, 256>}, {transform_indices = @transform_1, window_bounds = array<i64: 1, 1, 256>}, {transform_indices = @transform_2, window_bounds = array<i64: 1, 1, 256>}, {transform_indices = @transform_3, window_bounds = array<i64: 1, 1, 256>}]} {
    %c0_i32 = arith.constant 0 : i32
    %0 = arith.cmpi eq, %arg1, %c0_i32 : i32
    %1 = arith.extui %0 : i1 to i32
    %c0_i32_0 = arith.constant 0 : i32
    %2 = arith.cmpi ne, %1, %c0_i32_0 : i32
    scf.if %2 {
      %cst_28 = arith.constant 0.000000e+00 : f32
      %54 = vector.broadcast %cst_28 : f32 to vector<1x1x256xf32>
      %c0_29 = arith.constant 0 : index
      %c0_30 = arith.constant 0 : index
      %c0_31 = arith.constant 0 : index
      %55 = vector.load %arg4[%c0_29, %c0_30, %c0_31] : memref<1x1x256xf32, #tpu.memory_space<vmem>>, vector<1x1x256xf32>
      tpu.vector_store %arg4[%c0_29, %c0_30, %c0_31], %54 {strides = array<i32>} : memref<1x1x256xf32, #tpu.memory_space<vmem>>, vector<1x1x256xf32>,
      %cst_32 = arith.constant 0.000000e+00 : f32
      %56 = vector.broadcast %cst_32 : f32 to vector<1x1x256xf32>
      %c0_33 = arith.constant 0 : index
      %c0_34 = arith.constant 0 : index
      %c0_35 = arith.constant 0 : index
      %57 = vector.load %arg5[%c0_33, %c0_34, %c0_35] : memref<1x1x256xf32, #tpu.memory_space<vmem>>, vector<1x1x256xf32>
      tpu.vector_store %arg5[%c0_33, %c0_34, %c0_35], %56 {strides = array<i32>} : memref<1x1x256xf32, #tpu.memory_space<vmem>>, vector<1x1x256xf32>,
    } else {
    }
    %c0 = arith.constant 0 : index
    %c0_1 = arith.constant 0 : index
    %c0_2 = arith.constant 0 : index
    %3 = vector.load %arg2[%c0, %c0_1, %c0_2] : memref<1x4x256xf32, #tpu.memory_space<vmem>>, vector<1x4x256xf32>
    %c0_3 = arith.constant 0 : index
    %c0_4 = arith.constant 0 : index
    %c0_5 = arith.constant 0 : index
    %4 = vector.load %arg3[%c0_3, %c0_4, %c0_5] : memref<1x1x256xi32, #tpu.memory_space<vmem>>, vector<1x1x256xi32>
    %c256_i32 = arith.constant 256 : i32
    %5 = arith.muli %arg1, %c256_i32 : i32
    %6 = tpu.iota {dimensions = array<i32: 2>} : vector<1x1x256xi32>
    %7 = vector.broadcast %5 : i32 to vector<1x1x256xi32>
    %8 = arith.addi %7, %6 : vector<1x1x256xi32>
    %c256_i32_6 = arith.constant 256 : i32
    %9 = vector.broadcast %c256_i32_6 : i32 to vector<1x1x256xi32>
    %10 = arith.cmpi slt, %8, %9 : vector<1x1x256xi32>
    %cst = arith.constant dense<0xFF800000> : vector<1x256xf32>
    %11 = vector.multi_reduction <maximumf>, %3, %cst [1] : vector<1x4x256xf32> to vector<1x256xf32>
    %12 = vector.shape_cast %11 : vector<1x256xf32> to vector<1x1x256xf32>
    %13 = vector.broadcast %12 : vector<1x1x256xf32> to vector<1x4x256xf32>
    %14 = arith.subf %3, %13 : vector<1x4x256xf32>
    %15 = math.exp %14 : vector<1x4x256xf32>
    %cst_7 = arith.constant dense<0.000000e+00> : vector<1x256xf32>
    %16 = vector.multi_reduction <add>, %15, %cst_7 [1] : vector<1x4x256xf32> to vector<1x256xf32>
    %17 = vector.shape_cast %16 : vector<1x256xf32> to vector<1x1x256xf32>
    %18 = tpu.iota {dimensions = array<i32: 1>} : vector<1x4x256xi32>
    %19 = vector.broadcast %4 : vector<1x1x256xi32> to vector<1x4x256xi32>
    %20 = arith.cmpi eq, %18, %19 : vector<1x4x256xi32>
    %cst_8 = arith.constant 0.000000e+00 : f32
    %21 = vector.broadcast %cst_8 : f32 to vector<1x4x256xf32>
    %22 = arith.select %20, %3, %21 : vector<1x4x256xi1>, vector<1x4x256xf32>
    %cst_9 = arith.constant dense<0.000000e+00> : vector<1x256xf32>
    %23 = vector.multi_reduction <add>, %22, %cst_9 [1] : vector<1x4x256xf32> to vector<1x256xf32>
    %24 = vector.shape_cast %23 : vector<1x256xf32> to vector<1x1x256xf32>
    %cst_10 = arith.constant 0.000000e+00 : f32
    %25 = vector.broadcast %cst_10 : f32 to vector<1x4x256xf32>
    %26 = arith.select %20, %15, %25 : vector<1x4x256xi1>, vector<1x4x256xf32>
    %cst_11 = arith.constant dense<0.000000e+00> : vector<1x256xf32>
    %27 = vector.multi_reduction <add>, %26, %cst_11 [1] : vector<1x4x256xf32> to vector<1x256xf32>
    %28 = vector.shape_cast %27 : vector<1x256xf32> to vector<1x1x256xf32>
    %29 = math.log %17 : vector<1x1x256xf32>
    %30 = arith.addf %29, %12 : vector<1x1x256xf32>
    %31 = arith.subf %30, %24 : vector<1x1x256xf32>
    %32 = arith.divf %28, %17 : vector<1x1x256xf32>
    %c255_i32 = arith.constant 255 : i32
    %33 = vector.broadcast %c255_i32 : i32 to vector<1x1x256xi32>
    %34 = arith.cmpi ne, %4, %33 : vector<1x1x256xi32>
    %35 = arith.andi %34, %10 : vector<1x1x256xi1>
    %36 = arith.extui %35 : vector<1x1x256xi1> to vector<1x1x256xi32>
    %37 = arith.sitofp %36 : vector<1x1x256xi32> to vector<1x1x256xf32>
    %cst_12 = arith.constant 1.000000e+00 : f32
    %38 = vector.broadcast %cst_12 : f32 to vector<1x1x256xf32>
    %39 = arith.subf %38, %32 : vector<1x1x256xf32>
    %cst_13 = arith.constant 0.000000e+00 : f32
    %40 = vector.broadcast %cst_13 : f32 to vector<1x1x256xf32>
    %41 = arith.maximumf %39, %40 : vector<1x1x256xf32>
    %cst_14 = arith.constant 1.000000e+00 : f32
    %42 = vector.broadcast %cst_14 : f32 to vector<1x1x256xf32>
    %43 = arith.mulf %42, %41 : vector<1x1x256xf32>
    %44 = arith.mulf %43, %41 : vector<1x1x256xf32>
    %45 = arith.mulf %44, %31 : vector<1x1x256xf32>
    %cst_15 = arith.constant 0.000000e+00 : f32
    %46 = vector.broadcast %cst_15 : f32 to vector<1x1x256xf32>
    %47 = arith.select %35, %45, %46 : vector<1x1x256xi1>, vector<1x1x256xf32>
    %c0_16 = arith.constant 0 : index
    %c0_17 = arith.constant 0 : index
    %c0_18 = arith.constant 0 : index
    %48 = vector.load %arg4[%c0_16, %c0_17, %c0_18] : memref<1x1x256xf32, #tpu.memory_space<vmem>>, vector<1x1x256xf32>
    %49 = arith.addf %48, %47 : vector<1x1x256xf32>
    %c0_19 = arith.constant 0 : index
    %c0_20 = arith.constant 0 : index
    %c0_21 = arith.constant 0 : index
    %50 = vector.load %arg4[%c0_19, %c0_20, %c0_21] : memref<1x1x256xf32, #tpu.memory_space<vmem>>, vector<1x1x256xf32>
    tpu.vector_store %arg4[%c0_19, %c0_20, %c0_21], %49 {strides = array<i32>} : memref<1x1x256xf32, #tpu.memory_space<vmem>>, vector<1x1x256xf32>,
    %c0_22 = arith.constant 0 : index
    %c0_23 = arith.constant 0 : index
    %c0_24 = arith.constant 0 : index
    %51 = vector.load %arg5[%c0_22, %c0_23, %c0_24] : memref<1x1x256xf32, #tpu.memory_space<vmem>>, vector<1x1x256xf32>
    %52 = arith.addf %51, %37 : vector<1x1x256xf32>
    %c0_25 = arith.constant 0 : index
    %c0_26 = arith.constant 0 : index
    %c0_27 = arith.constant 0 : index
    %53 = vector.load %arg5[%c0_25, %c0_26, %c0_27] : memref<1x1x256xf32, #tpu.memory_space<vmem>>, vector<1x1x256xf32>
    tpu.vector_store %arg5[%c0_25, %c0_26, %c0_27], %52 {strides = array<i32>} : memref<1x1x256xf32, #tpu.memory_space<vmem>>, vector<1x1x256xf32>,
    return
  }
  func.func @transform_0(%arg0: i32, %arg1: i32) -> (i32, i32, i32) {
    %c0_i32 = arith.constant 0 : i32
    %c0_i32_0 = arith.constant 0 : i32
    return %arg0, %c0_i32, %arg1 : i32, i32, i32
  }
  func.func @transform_1(%arg0: i32, %arg1: i32) -> (i32, i32, i32) {
    %c0_i32 = arith.constant 0 : i32
    %c0_i32_0 = arith.constant 0 : i32
    return %arg0, %c0_i32, %arg1 : i32, i32, i32
  }
  func.func @transform_2(%arg0: i32, %arg1: i32) -> (i32, i32, i32) {
    %c0_i32 = arith.constant 0 : i32
    %c0_i32_0 = arith.constant 0 : i32
    %c0_i32_1 = arith.constant 0 : i32
    return %arg0, %c0_i32, %c0_i32_0 : i32, i32, i32
  }
  func.func @transform_3(%arg0: i32, %arg1: i32) -> (i32, i32, i32) {
    %c0_i32 = arith.constant 0 : i32
    %c0_i32_0 = arith.constant 0 : i32
    %c0_i32_1 = arith.constant 0 : i32
    return %arg0, %c0_i32, %c0_i32_0 : i32, i32, i32
  }
}

</mosaic_0001>

<llo_original>
// kernel: tpu_custom_call.1
$region0: #{tpu_custom_call.1}
  #allocation0 [shape = 'u32[]', space=smem, size = 0x4, offset = 0x4, fixed_abs, tag = 'smem constant byte address 0x4 - core index']
  #allocation1 [shape = 'u32[144,128]{1,0:T(1,128)}', space=vmem, size = 0x12000, scoped, tag = 'internal scratch']
  %s0 = inlined_call_operand.hbm [shape: f32[2,4,256], index: 0, kind: input, shape index: {}]
  %s1 = inlined_call_operand.hbm [shape: s32[2,1,256], index: 1, kind: input, shape index: {}]
  %s2 = inlined_call_operand.hbm [shape: f32[2,1,256], index: 2, kind: output, shape index: {0}]
  %s3 = inlined_call_operand.hbm [shape: f32[2,1,256], index: 3, kind: output, shape index: {1}]
  %4 = xla_tuple %s2, %s3
  %s5 = sld [smem:[#allocation0]]
  $region61: #{tpu_custom_call.1} parent=0
    _
  %s7 = ssub.s32 1, %s5
  %s8 = scalar_select 0, %s7, %s5
  $region1: #{tpu_custom_call.1} parent=0
    #allocation2 [shape = 'u8[8192]{0}', space=vmem, size = 0x2000, scoped, tag = 'input window, operand 0']
    #allocation3 [shape = 's32[2]{0}', space=sflag, size = 0x8, scoped, tag = 'scoped memory for tpu_custom_call.1']
    #allocation4 [shape = 's32[2]{0}', space=sflag, size = 0x8, scoped, tag = 'scoped memory for tpu_custom_call.1']
    #allocation5 [shape = 'u8[2048]{0}', space=vmem, size = 0x800, scoped, tag = 'input window, operand 1']
    #allocation6 [shape = 's32[2]{0}', space=sflag, size = 0x8, scoped, tag = 'scoped memory for tpu_custom_call.1']
    #allocation7 [shape = 'u8[2048]{0}', space=vmem, size = 0x800, scoped, tag = 'output window, operand 0']
    #allocation8 [shape = 'u8[2048]{0}', space=vmem, size = 0x800, scoped, tag = 'output window, operand 1']
    #allocation9 [shape = 's32[2]{0}', space=sflag, size = 0x8, scoped, tag = 'scoped memory for tpu_custom_call.1']
    %9 = vsyncpa [#allocation3], 0
    %s10 = scalar_lea.sflag [#allocation3], 1
    %11 = vsyncpa %s10, 0
    %12 = vsyncpa [#allocation6], 0
    %s13 = scalar_lea.sflag [#allocation6], 1
    %14 = vsyncpa %s13, 0
    %15 = vsyncpa [#allocation4], 0
    %s16 = scalar_lea.sflag [#allocation4], 1
    %17 = vsyncpa %s16, 0
    %18 = vsyncpa [#allocation9], 0
    %s19 = scalar_lea.sflag [#allocation9], 1
    %20 = vsyncpa %s19, 0
    loop: start=0, step=1, limit=4
    $region2: #{tpu_custom_call.1} parent=1 // loop_pre_header
      _
    $region3: #{tpu_custom_call.1} parent=1 // loop_header
      %s22 = sphi 0, %s26
      %p23 = scmp.ge.s32.totalorder %s22, 4
      %s29 = sphi 0, %s41
      %s30 = sphi 0, %s37
      %s31 = sphi 0, %s29
      %s32 = sphi 0, %s30
      %s33 = sphi 0, %s31
      %s34 = sphi 0, %s32
      %s46 = sphi 0, %s48
      %s49 = sphi 0, %s46
      %s50 = sphi 0, %s49
      %s66 = sphi 0, %s50
      %s74 = sphi 0, %s76
      %s77 = sphi 0, %s74
      %s78 = sphi 0, %s77
      %s94 = sphi 0, %s78
      %s100 = sphi 0, %s102
      %s103 = sphi 0, %s100
      %s104 = sphi 0, %s103
      %s120 = sphi 0, %s104
      %s126 = sphi 0, %s128
      %s129 = sphi 0, %s126
      %s130 = sphi 0, %s129
      %s146 = sphi 0, %s130
    $region4: #{tpu_custom_call.1} parent=1 // loop_header_branch
      %25 = sbr.rel (%p23) target = $region8
    $region5: #{tpu_custom_call.1} parent=1 // loop_body
      %s27 = ssub.s32 %s22, 1
      %s28 = ssub.s32 %s22, 2
      %s35 = sadd.s32 1, %s30
      %p36 = scmp.ge.s32.totalorder %s35, 1
      %s37 = scalar_select %p36, 0, %s35
      %s38 = sadd.s32 1, %s29
      %s39 = scalar_select %p36, %s38, %s29
      %p40 = scmp.ge.s32.totalorder %s39, 2
      %s41 = scalar_select %p40, 0, %s39
      %s42 = ssub.s32 %s29, %s41
      %s43 = ssub.s32 %s30, %s37
      %s44 = sor.u32 %s42, %s43
      %p45 = scmp.eq.s32.totalorder %s44, 0
      %s47 = sadd.s32 %s46, 1
      %s48 = scalar_select %p45, %s46, %s47
      %p51 = pneg %p45
      %p52 = scmp.eq.s32.totalorder %s22, 1
      %p53 = por %p51, %p52
      %p54 = scmp.ne.s32.totalorder %s46, %s49
      %p55 = scmp.eq.s32.totalorder %s22, 0
      %p56 = por %p54, %p55
      %p57 = scmp.ne.s32.totalorder %s46, %s49
      %p58 = scmp.eq.s32.totalorder %s27, 1
      %p59 = por %p57, %p58
      %p60 = scmp.ne.s32.totalorder %s49, %s50
      %p61 = scmp.eq.s32.totalorder %s27, 0
      %p62 = por %p60, %p61
      %p63 = scmp.ne.s32.totalorder %s49, %s50
      %p64 = scmp.eq.s32.totalorder %s28, 1
      %p65 = por %p63, %p64
      %p67 = scmp.ne.s32.totalorder %s50, %s66
      %p68 = scmp.eq.s32.totalorder %s28, 0
      %p69 = por %p67, %p68
      %s70 = ssub.s32 %s29, %s41
      %s71 = ssub.s32 %s30, %s37
      %s72 = sor.u32 %s70, %s71
      %p73 = scmp.eq.s32.totalorder %s72, 0
      %s75 = sadd.s32 %s74, 1
      %s76 = scalar_select %p73, %s74, %s75
      %p79 = pneg %p73
      %p80 = scmp.eq.s32.totalorder %s22, 1
      %p81 = por %p79, %p80
      %p82 = scmp.ne.s32.totalorder %s74, %s77
      %p83 = scmp.eq.s32.totalorder %s22, 0
      %p84 = por %p82, %p83
      %p85 = scmp.ne.s32.totalorder %s74, %s77
      %p86 = scmp.eq.s32.totalorder %s27, 1
      %p87 = por %p85, %p86
      %p88 = scmp.ne.s32.totalorder %s77, %s78
      %p89 = scmp.eq.s32.totalorder %s27, 0
      %p90 = por %p88, %p89
      %p91 = scmp.ne.s32.totalorder %s77, %s78
      %p92 = scmp.eq.s32.totalorder %s28, 1
      %p93 = por %p91, %p92
      %p95 = scmp.ne.s32.totalorder %s78, %s94
      %p96 = scmp.eq.s32.totalorder %s28, 0
      %p97 = por %p95, %p96
      %s98 = ssub.s32 %s29, %s41
      %p99 = scmp.eq.s32.totalorder %s98, 0
      %s101 = sadd.s32 %s100, 1
      %s102 = scalar_select %p99, %s100, %s101
      %p105 = pneg %p99
      %p106 = scmp.eq.s32.totalorder %s22, 1
      %p107 = por %p105, %p106
      %p108 = scmp.ne.s32.totalorder %s100, %s103
      %p109 = scmp.eq.s32.totalorder %s22, 0
      %p110 = por %p108, %p109
      %p111 = scmp.ne.s32.totalorder %s100, %s103
      %p112 = scmp.eq.s32.totalorder %s27, 1
      %p113 = por %p111, %p112
      %p114 = scmp.ne.s32.totalorder %s103, %s104
      %p115 = scmp.eq.s32.totalorder %s27, 0
      %p116 = por %p114, %p115
      %p117 = scmp.ne.s32.totalorder %s103, %s104
      %p118 = scmp.eq.s32.totalorder %s28, 1
      %p119 = por %p117, %p118
      %p121 = scmp.ne.s32.totalorder %s104, %s120
      %p122 = scmp.eq.s32.totalorder %s28, 0
      %p123 = por %p121, %p122
      %s124 = ssub.s32 %s29, %s41
      %p125 = scmp.eq.s32.totalorder %s124, 0
      %s127 = sadd.s32 %s126, 1
      %s128 = scalar_select %p125, %s126, %s127
      %p131 = pneg %p125
      %p132 = scmp.eq.s32.totalorder %s22, 1
      %p133 = por %p131, %p132
      %p134 = scmp.ne.s32.totalorder %s126, %s129
      %p135 = scmp.eq.s32.totalorder %s22, 0
      %p136 = por %p134, %p135
      %p137 = scmp.ne.s32.totalorder %s126, %s129
      %p138 = scmp.eq.s32.totalorder %s27, 1
      %p139 = por %p137, %p138
      %p140 = scmp.ne.s32.totalorder %s129, %s130
      %p141 = scmp.eq.s32.totalorder %s27, 0
      %p142 = por %p140, %p141
      %p143 = scmp.ne.s32.totalorder %s129, %s130
      %p144 = scmp.eq.s32.totalorder %s28, 1
      %p145 = por %p143, %p144
      %p147 = scmp.ne.s32.totalorder %s130, %s146
      %p148 = scmp.eq.s32.totalorder %s28, 0
      %p149 = por %p147, %p148
      %p150 = scmp.le.s32.totalorder 1, %s22
      %p151 = scmp.lt.s32.totalorder %s22, 3
      %p152 = pnand %p150, %p151
      %p153 = pneg %p152
      // Predicated region
      $region9: #{tpu_custom_call.1} parent=5 // pred_check
        _
      $region10: #{tpu_custom_call.1} parent=5 // pred_check_branch
        %155 = sbr.rel (%p152) target = $region12
      $region11: #{tpu_custom_call.1} parent=5 // pred_region
        %s156 = ssub.s32 %s22, 1
      $region12: #{tpu_custom_call.1} parent=5 // pred_fallthru
        _
      %p157 = scmp.lt.s32.totalorder %s22, 2
      // Predicated region
      $region13: #{tpu_custom_call.1} parent=5 // pred_check
        %p158 = pneg %p157
      $region14: #{tpu_custom_call.1} parent=5 // pred_check_branch
        %160 = sbr.rel (%p158) target = $region16
      $region15: #{tpu_custom_call.1} parent=5 // pred_region
        // Predicated region
        $region17: #{tpu_custom_call.1} parent=15 // pred_check
          %p161 = pneg %p56
        $region18: #{tpu_custom_call.1} parent=15 // pred_check_branch
          %163 = sbr.rel (%p161) target = $region20
        $region19: #{tpu_custom_call.1} parent=15 // pred_region
          %s164 = sand.u32 %s46, 1
          %s165 = scalar_lea.sflag [#allocation3], %s164
          %s166 = sand.u32 %s46, 1
          %s167 = smul.addr %s166, 8
          %s168 = scalar_lea.vmem [#allocation2], %s167
          %s169 = smul.u32 2, %s30
          %s171 = ssub.s32 128, 128
          %172 = vsyncadd %s165, %s171
          %s173 = smul.addr %s29, 2
          %s174 = sadd.s32 %s169, %s173
          %s175 = smul.addr %s174, 64
          %s176 = scalar_lea.hbm %s0, %s175
          %s178 = sshll.u32 %s168, 4
          %s179 = int_to_ptr.vmem [resolvable:$true] %s178
          %181 = dma.hbm_to_vmem [thread:$0]  %s176, 128, %s179, %s165
        $region20: #{tpu_custom_call.1} parent=15 // pred_fallthru
          _
        // Predicated region
        $region21: #{tpu_custom_call.1} parent=15 // pred_check
          %p182 = pneg %p84
        $region22: #{tpu_custom_call.1} parent=15 // pred_check_branch
          %184 = sbr.rel (%p182) target = $region24
        $region23: #{tpu_custom_call.1} parent=15 // pred_region
          %s185 = sand.u32 %s74, 1
          %s186 = scalar_lea.sflag [#allocation6], %s185
          %s187 = sand.u32 %s74, 1
          %s188 = smul.addr %s187, 2
          %s189 = scalar_lea.vmem [#allocation5], %s188
          %s190 = smul.u32 2, %s30
          %s192 = ssub.s32 32, 32
          %193 = vsyncadd %s186, %s192
          %s194 = smul.addr %s29, 2
          %s195 = sadd.s32 %s190, %s194
          %s196 = smul.addr %s195, 16
          %s197 = scalar_lea.hbm %s1, %s196
          %s199 = sshll.u32 %s189, 4
          %s200 = int_to_ptr.vmem [resolvable:$true] %s199
          %202 = dma.hbm_to_vmem [thread:$0]  %s197, 32, %s200, %s186
        $region24: #{tpu_custom_call.1} parent=15 // pred_fallthru
          _
      $region16: #{tpu_custom_call.1} parent=5 // pred_fallthru
        _
      %p203 = scmp.le.s32.totalorder 1, %s22
      %p204 = scmp.lt.s32.totalorder %s22, 3
      %p205 = pnand %p203, %p204
      %p206 = pneg %p205
      // Predicated region
      $region25: #{tpu_custom_call.1} parent=5 // pred_check
        _
      $region26: #{tpu_custom_call.1} parent=5 // pred_check_branch
        %208 = sbr.rel (%p205) target = $region28
      $region27: #{tpu_custom_call.1} parent=5 // pred_region
        %s209 = ssub.s32 %s22, 1
        %s210 = sand.u32 %s49, 1
        %s211 = scalar_lea.sflag [#allocation3], %s210
        %s212 = sand.u32 %s49, 1
        %s213 = smul.addr %s212, 8
        %s214 = scalar_lea.vmem [#allocation2], %s213
        // Predicated region
        $region29: #{tpu_custom_call.1} parent=27 // pred_check
          %p215 = pneg %p62
        $region30: #{tpu_custom_call.1} parent=27 // pred_check_branch
          %217 = sbr.rel (%p215) target = $region32
        $region31: #{tpu_custom_call.1} parent=27 // pred_region
          %218 = dma.done %s211, 128
        $region32: #{tpu_custom_call.1} parent=27 // pred_fallthru
          _
        %s219 = sand.u32 %s77, 1
        %s220 = scalar_lea.sflag [#allocation6], %s219
        %s221 = sand.u32 %s77, 1
        %s222 = smul.addr %s221, 2
        %s223 = scalar_lea.vmem [#allocation5], %s222
        // Predicated region
        $region33: #{tpu_custom_call.1} parent=27 // pred_check
          %p224 = pneg %p90
        $region34: #{tpu_custom_call.1} parent=27 // pred_check_branch
          %226 = sbr.rel (%p224) target = $region36
        $region35: #{tpu_custom_call.1} parent=27 // pred_region
          %227 = dma.done %s220, 32
        $region36: #{tpu_custom_call.1} parent=27 // pred_fallthru
          _
        %s228 = sand.u32 %s49, 1
        %s229 = scalar_lea.sflag [#allocation3], %s228
        %s230 = sand.u32 %s49, 1
        %s231 = smul.addr %s230, 8
        %s232 = scalar_lea.vmem [#allocation2], %s231
        %p233 = pneg %p62
        %p234 = pneg %p59
        %s235 = sand.u32 %s77, 1
        %s236 = scalar_lea.sflag [#allocation6], %s235
        %s237 = sand.u32 %s77, 1
        %s238 = smul.addr %s237, 2
        %s239 = scalar_lea.vmem [#allocation5], %s238
        %p240 = pneg %p90
        %p241 = pneg %p87
        %p242 = pneg %p116
        %p243 = pneg %p113
        %s244 = sand.u32 %s103, 1
        %s245 = scalar_lea.sflag [#allocation4], %s244
        %s246 = sand.u32 %s103, 1
        %s247 = smul.addr %s246, 2
        %s248 = scalar_lea.vmem [#allocation7], %s247
        %p249 = pneg %p142
        %p250 = pneg %p139
        %s251 = sand.u32 %s129, 1
        %s252 = scalar_lea.sflag [#allocation9], %s251
        %s253 = sand.u32 %s129, 1
        %s254 = smul.addr %s253, 2
        %s255 = scalar_lea.vmem [#allocation8], %s254
        %s256 = smul.u32 2, %s32
        %s257 = smul.u32 2, %s32
        %p258 = scmp.eq.s32.totalorder %s32, 0
        // Predicated region
        $region37: #{tpu_custom_call.1} parent=27 // pred_check
          %p259 = pneg %p258
        $region38: #{tpu_custom_call.1} parent=27 // pred_check_branch
          %261 = sbr.rel (%p259) target = $region40
        $region39: #{tpu_custom_call.1} parent=27 // pred_region
          %v262 = vlaneseq
          %vm263 = vcmp.ge.s32.totalorder %v262, 0
          %vm264 = vcmp.lt.s32.totalorder %v262, 256
          %vm265 = vmand %vm263, %vm264
          %266 = vst.msk [vmem:[%s248] sm:$0x3] %vm265, 0.0
          %267 = vst.msk [vmem:[%s255] sm:$0x3] %vm265, 0.0
        $region40: #{tpu_custom_call.1} parent=27 // pred_fallthru
          _
        %v268 = vld [vmem:[%s214] sm:$0xff]
        %v269 = vld [vmem:[%s223] sm:$0x3]
        %s270 = smul.u32 %s32, 256
        %v271 = vlaneseq
        %v272 = vand.u32 %v271, 127
        %v273 = vadd.s32 %v272, 128
        %v274 = vstv %s270
        %v275 = vadd.s32 %v274, %v272
        %v276 = vadd.s32 %v274, %v273
        %vm277 = vcmp.lt.s32.totalorder %v275, 256
        %vm278 = vcmp.lt.s32.totalorder %v276, 256
        %v280 = vcombine.high %v268, %v268
        %vm282 = vcmask 1043456
        %v283 = vsel %vm282, %v268, -inf
        %v284 = vrot.slane %v283, 4
        %v285 = vmax.f32 %v283, %v284
        %v286 = vrot.slane %v285, 2
        %v287 = vmax.f32 %v285, %v286
        %v288 = vrot.slane %v287, 1
        %v289 = vmax.f32 %v287, %v288
        %v290 = vsel %vm282, %v280, -inf
        %v291 = vrot.slane %v290, 4
        %v292 = vmax.f32 %v290, %v291
        %v293 = vrot.slane %v292, 2
        %v294 = vmax.f32 %v292, %v293
        %v295 = vrot.slane %v294, 1
        %v296 = vmax.f32 %v294, %v295
        %v299 = vcombine.low %v289, %v296
        %v301 = vsub.f32 %v268, %v299
        %v302 = vmul.f32 %v301, 1.442695
        %v303 = vpow.pop %v302
        %v305 = vcombine.high %v303, %v303
        %v307 = vsel %vm282, %v303, 0.0
        %v308 = vrot.slane %v307, 4
        %v309 = vadd.f32 %v307, %v308
        %v310 = vrot.slane %v309, 2
        %v311 = vadd.f32 %v309, %v310
        %v312 = vrot.slane %v311, 1
        %v313 = vadd.f32 %v311, %v312
        %v314 = vsel %vm282, %v305, 0.0
        %v315 = vrot.slane %v314, 4
        %v316 = vadd.f32 %v314, %v315
        %v317 = vrot.slane %v316, 2
        %v318 = vadd.f32 %v316, %v317
        %v319 = vrot.slane %v318, 1
        %v320 = vadd.f32 %v318, %v319
        %v321 = vlaneseq
        %v322 = vshrl.u32 %v321, 7
        %v323 = vlaneseq
        %v324 = vshrl.u32 %v323, 7
        %v325 = vsub.s32 0, %v324
        %v326 = vrot.slane %v269, %v325
        %v327 = vlaneseq
        %v328 = vshrl.u32 %v327, 7
        %v329 = vsub.s32 1, %v328
        %v330 = vrot.slane %v269, %v329
        %vm331 = vcmp.eq.s32.totalorder %v322, %v326
        %vm332 = vcmp.eq.s32.totalorder %v322, %v330
        %v333 = vsel %vm331, %v268, 0.0
        %v334 = vsel %vm332, %v280, 0.0
        %v335 = vsel %vm282, %v333, 0.0
        %v336 = vrot.slane %v335, 4
        %v337 = vadd.f32 %v335, %v336
        %v338 = vrot.slane %v337, 2
        %v339 = vadd.f32 %v337, %v338
        %v340 = vrot.slane %v339, 1
        %v341 = vadd.f32 %v339, %v340
        %v342 = vsel %vm282, %v334, 0.0
        %v343 = vrot.slane %v342, 4
        %v344 = vadd.f32 %v342, %v343
        %v345 = vrot.slane %v344, 2
        %v346 = vadd.f32 %v344, %v345
        %v347 = vrot.slane %v346, 1
        %v348 = vadd.f32 %v346, %v347
        %v349 = vsel %vm331, %v303, 0.0
        %v350 = vsel %vm332, %v305, 0.0
        %v351 = vsel %vm282, %v349, 0.0
        %v352 = vrot.slane %v351, 4
        %v353 = vadd.f32 %v351, %v352
        %v354 = vrot.slane %v353, 2
        %v355 = vadd.f32 %v353, %v354
        %v356 = vrot.slane %v355, 1
        %v357 = vadd.f32 %v355, %v356
        %v358 = vsel %vm282, %v350, 0.0
        %v359 = vrot.slane %v358, 4
        %v360 = vadd.f32 %v358, %v359
        %v361 = vrot.slane %v360, 2
        %v362 = vadd.f32 %v360, %v361
        %v363 = vrot.slane %v362, 1
        %v364 = vadd.f32 %v362, %v363
        %v365 = vlog2.pop %v313
        %v366 = vmul.f32 %v365, 0.6931472
        %v367 = vlog2.pop %v320
        %v368 = vmul.f32 %v367, 0.6931472
        %v369 = vadd.f32 %v366, %v289
        %v370 = vadd.f32 %v368, %v296
        %v371 = vsub.f32 %v369, %v341
        %v372 = vsub.f32 %v370, %v348
        %v373 = vrcp.pop %v313
        %v374 = vmul.f32 %v357, %v373
        %v375 = vrcp.pop %v320
        %v376 = vmul.f32 %v364, %v375
        %vm377 = vcmp.ne.s32.totalorder %v269, 255
        %v378 = vsel %vm277, 1, 0
        %v379 = vsel %vm278, 1, 0
        %v380 = vcombine.low %v378, %v379
        %v382 = vunpack.c.l.s4 1966171168
        %v383 = vunpack.c.0.s8 %v382
        %v384 = vlaneseq
        %v385 = vshrl.u32 %v384, 7
        %v386 = vsub.s32 %v383, %v385
        %v387 = vrot.slane %v380, %v386
        %v389 = vunpack.c.l.s4 1966171168
        %v390 = vunpack.c.0.s8 %v389
        %v391 = vlaneseq
        %v392 = vshrl.u32 %v391, 7
        %v393 = vsub.s32 %v390, %v392
        %v394 = vrot.slane %v387, %v393
        %vm395 = vcmp.ne.s32.totalorder %v394, 0
        %vm396 = vmand %vm377, %vm395
        %v397 = vsel %vm396, 1, 0
        %v398 = vcvt.s32.f32 %v397
        %v399 = vsub.f32 1.0, %v374
        %v400 = vsub.f32 1.0, %v376
        %v401 = vmax.f32 %v399, 0.0
        %v402 = vmax.f32 %v400, 0.0
        %v403 = vmul.f32 %v401, %v401
        %v404 = vmul.f32 %v402, %v402
        %v405 = vmul.f32 %v403, %v371
        %v406 = vmul.f32 %v404, %v372
        %v409 = vcombine.low %v405, %v406
        %v411 = vunpack.c.l.s4 1966171168
        %v412 = vunpack.c.0.s8 %v411
        %v413 = vlaneseq
        %v414 = vshrl.u32 %v413, 7
        %v415 = vsub.s32 %v412, %v414
        %v416 = vrot.slane %v409, %v415
        %v418 = vunpack.c.l.s4 1966171168
        %v419 = vunpack.c.0.s8 %v418
        %v420 = vlaneseq
        %v421 = vshrl.u32 %v420, 7
        %v422 = vsub.s32 %v419, %v421
        %v423 = vrot.slane %v416, %v422
        %v425 = vsel %vm396, %v423, 0.0
        %v426 = vld [vmem:[%s248] sm:$0x3]
        %v427 = vadd.f32 %v426, %v425
        %v428 = vlaneseq
        %vm429 = vcmp.ge.s32.totalorder %v428, 0
        %vm430 = vcmp.lt.s32.totalorder %v428, 256
        %vm431 = vmand %vm429, %vm430
        %432 = vst.msk [vmem:[%s248] sm:$0x3] %vm431, %v427
        %v433 = vld [vmem:[%s255] sm:$0x3]
        %v434 = vadd.f32 %v433, %v398
        %435 = vst.msk [vmem:[%s255] sm:$0x3] %vm431, %v434
        %s436 = sand.u32 %s103, 1
        %s437 = scalar_lea.sflag [#allocation4], %s436
        %s438 = sand.u32 %s103, 1
        %s439 = smul.addr %s438, 2
        %s440 = scalar_lea.vmem [#allocation7], %s439
        %s441 = sand.u32 %s129, 1
        %s442 = scalar_lea.sflag [#allocation9], %s441
        %s443 = sand.u32 %s129, 1
        %s444 = smul.addr %s443, 2
        %s445 = scalar_lea.vmem [#allocation8], %s444
        // Predicated region
        $region41: #{tpu_custom_call.1} parent=27 // pred_check
          %p446 = pneg %p113
        $region42: #{tpu_custom_call.1} parent=27 // pred_check_branch
          %448 = sbr.rel (%p446) target = $region44
        $region43: #{tpu_custom_call.1} parent=27 // pred_region
          %s450 = ssub.s32 32, 32
          %451 = vsyncadd %s437, %s450
          %s452 = smul.addr %s31, 2
          %s453 = smul.addr %s452, 16
          %s454 = scalar_lea.hbm %s2, %s453
          %s456 = sshll.u32 %s440, 4
          %s457 = int_to_ptr.vmem [resolvable:$true] %s456
          %459 = dma.vmem_to_hbm [thread:$0]  %s457, 32, %s454, %s437
        $region44: #{tpu_custom_call.1} parent=27 // pred_fallthru
          _
        // Predicated region
        $region45: #{tpu_custom_call.1} parent=27 // pred_check
          %p460 = pneg %p139
        $region46: #{tpu_custom_call.1} parent=27 // pred_check_branch
          %462 = sbr.rel (%p460) target = $region48
        $region47: #{tpu_custom_call.1} parent=27 // pred_region
          %s464 = ssub.s32 32, 32
          %465 = vsyncadd %s442, %s464
          %s466 = smul.addr %s31, 2
          %s467 = smul.addr %s466, 16
          %s468 = scalar_lea.hbm %s3, %s467
          %s470 = sshll.u32 %s445, 4
          %s471 = int_to_ptr.vmem [resolvable:$true] %s470
          %473 = dma.vmem_to_hbm [thread:$0]  %s471, 32, %s468, %s442
        $region48: #{tpu_custom_call.1} parent=27 // pred_fallthru
          _
      $region28: #{tpu_custom_call.1} parent=5 // pred_fallthru
        _
      %p474 = scmp.le.s32.totalorder 2, %s22
      // Predicated region
      $region49: #{tpu_custom_call.1} parent=5 // pred_check
        %p475 = pneg %p474
      $region50: #{tpu_custom_call.1} parent=5 // pred_check_branch
        %477 = sbr.rel (%p475) target = $region52
      $region51: #{tpu_custom_call.1} parent=5 // pred_region
        %s478 = ssub.s32 %s22, 2
        // Predicated region
        $region53: #{tpu_custom_call.1} parent=51 // pred_check
          %p479 = pneg %p119
        $region54: #{tpu_custom_call.1} parent=51 // pred_check_branch
          %481 = sbr.rel (%p479) target = $region56
        $region55: #{tpu_custom_call.1} parent=51 // pred_region
          %s482 = sand.u32 %s104, 1
          %s483 = scalar_lea.sflag [#allocation4], %s482
          %s484 = sand.u32 %s104, 1
          %s485 = smul.addr %s484, 2
          %s486 = scalar_lea.vmem [#allocation7], %s485
          %487 = dma.done %s483, 32
        $region56: #{tpu_custom_call.1} parent=51 // pred_fallthru
          _
        // Predicated region
        $region57: #{tpu_custom_call.1} parent=51 // pred_check
          %p488 = pneg %p145
        $region58: #{tpu_custom_call.1} parent=51 // pred_check_branch
          %490 = sbr.rel (%p488) target = $region60
        $region59: #{tpu_custom_call.1} parent=51 // pred_region
          %s491 = sand.u32 %s130, 1
          %s492 = scalar_lea.sflag [#allocation9], %s491
          %s493 = sand.u32 %s130, 1
          %s494 = smul.addr %s493, 2
          %s495 = scalar_lea.vmem [#allocation8], %s494
          %496 = dma.done %s492, 32
        $region60: #{tpu_custom_call.1} parent=51 // pred_fallthru
          _
      $region52: #{tpu_custom_call.1} parent=5 // pred_fallthru
        _
    $region6: #{tpu_custom_call.1} parent=1 // loop_footer
      %s26 = sadd.s32 1, %s22
    $region7: #{tpu_custom_call.1} parent=1 // loop_footer_branch
      %21 = sbr.rel target = $region3
    $region8: #{tpu_custom_call.1} parent=1 // loop_exit
      _
    %497 = vsyncpa [#allocation3], 1
    %s498 = scalar_lea.sflag [#allocation3], 1
    %499 = vsyncpa %s498, 1
    %500 = vsyncpa [#allocation6], 1
    %s501 = scalar_lea.sflag [#allocation6], 1
    %502 = vsyncpa %s501, 1
    %503 = vsyncpa [#allocation4], 1
    %s504 = scalar_lea.sflag [#allocation4], 1
    %505 = vsyncpa %s504, 1
    %506 = vsyncpa [#allocation9], 1
    %s507 = scalar_lea.sflag [#allocation9], 1
    %508 = vsyncpa %s507, 1

</llo_original>
